<compile_context>
chip_gen: v6e
topology: v6e:2x2x1
jax: 0.10.0
libtpu: 0.0.40
codegen_flags: <defaults>
</compile_context>

<pallas_src>
import jax
import jax.numpy as jnp
from jax.experimental import pallas as pl
from jax.experimental.pallas import tpu as pltpu


def _round_up(n, m):
    return ((n + m - 1) // m) * m


def decoder_kernel(x_ref, w1_ref, b1_ref, w2_ref, b2_ref, out_ref):
    # In-kernel bf16 cast of x (free VPU work hidden under the matmul DMA).
    x = x_ref[...].astype(jnp.bfloat16)

    # Layer 1: bf16 operands on the MXU, f32 accumulation; bias+ReLU in f32.
    h = jnp.dot(x, w1_ref[...], preferred_element_type=jnp.float32)
    h = jnp.maximum(h + b1_ref[...], 0.0)

    # Layer 2: re-cast activation to bf16 for the MXU, accumulate in f32.
    o = jnp.dot(h.astype(jnp.bfloat16), w2_ref[...],
                preferred_element_type=jnp.float32)
    o = o + b2_ref[...]
    out_ref[...] = jax.nn.sigmoid(o).astype(out_ref.dtype)   # sigmoid on EUP


def prepare_params(w1, b1, w2, b2):
    """One-time pad+cast of the (constant) parameters.

    Hidden dim is zero-padded to a 128-lane multiple (padded hidden units are
    exactly zero after ReLU and multiply zero rows of w2, so the math is
    unchanged). Input (latent) and output dims are left unpadded — their
    blocks use the full array dim, which BlockSpec permits.
    """
    L, H = w1.shape
    O = w2.shape[1]
    Hp = _round_up(H, 128)
    w1_p = jnp.pad(w1, ((0, 0), (0, Hp - H))).astype(jnp.bfloat16)
    b1_p = jnp.pad(b1, ((0, 0), (0, Hp - H))).astype(jnp.float32)
    w2_p = jnp.pad(w2, ((0, Hp - H), (0, 0))).astype(jnp.bfloat16)
    b2_p = b2.astype(jnp.float32)
    return w1_p, b1_p, w2_p, b2_p


def decoder_forward(x, w1_p, b1_p, w2_p, b2_p, *, block_b=512):
    """x: (B, latent_dim) f32 (unpadded). Params are the prepare_params outputs.

    Returns (B, output_dim) f32.
    """
    B, L = x.shape
    Hp = w1_p.shape[1]
    O = w2_p.shape[1]

    # Batch tile: as large as the cap allows, but keep >= 2 grid steps for
    # small batches so v7x can shard the "parallel" axis across both TCs.
    tile_b = min(block_b, _round_up(max(-(-B // 2), 1), 8))
    Bp = _round_up(B, tile_b)

    # Only pad the batch (rows) when it does not divide the tile; features
    # stay unpadded so there is no per-call pad/cast pass over x.
    x_in = x if Bp == B else jnp.pad(x, ((0, Bp - B), (0, 0)))

    out_p = pl.pallas_call(
        decoder_kernel,
        out_shape=jax.ShapeDtypeStruct((Bp, O), jnp.float32),
        grid_spec=pltpu.PrefetchScalarGridSpec(
            num_scalar_prefetch=0,
            grid=(Bp // tile_b,),
            in_specs=[
                pl.BlockSpec((tile_b, L), lambda i: (i, 0)),   # x: one batch tile / step
                pl.BlockSpec((L, Hp), lambda i: (0, 0)),       # w1: VMEM-resident
                pl.BlockSpec((1, Hp), lambda i: (0, 0)),       # b1: VMEM-resident
                pl.BlockSpec((Hp, O), lambda i: (0, 0)),       # w2: VMEM-resident
                pl.BlockSpec((1, O), lambda i: (0, 0)),        # b2: VMEM-resident
            ],
            out_specs=pl.BlockSpec((tile_b, O), lambda i: (i, 0)),
        ),
        compiler_params=pltpu.CompilerParams(
            # Batch axis parallel -> v7x shards the grid across its 2 TCs.
            # NOTE: if scaled to real MNIST dims (H=512, O=784) with much
            # larger tiles, cap tile_b (default 512 is safe) or raise
            # vmem_limit_bytes for v5e's 16 MiB default scoped-VMEM limit.
            dimension_semantics=("parallel",),
        ),
    )(x_in, w1_p, b1_p, w2_p, b2_p)

    # Slice only when the batch was actually padded; columns are never padded.
    return out_p if Bp == B else out_p[:B]


def init_params(key, latent_dim, hidden_dim, output_dim):
    """Deterministic parameter init (Kaiming-uniform-ish, like nn.Linear)."""
    k1, k2, k3, k4 = jax.random.split(key, 4)
    lim1 = 1.0 / jnp.sqrt(latent_dim)
    lim2 = 1.0 / jnp.sqrt(hidden_dim)
    # Stored as (in, out) so the kernel does x @ W + b (== PyTorch x @ W.T + b).
    w1 = jax.random.uniform(k1, (latent_dim, hidden_dim), jnp.float32, -lim1, lim1)
    b1 = jax.random.uniform(k2, (1, hidden_dim), jnp.float32, -lim1, lim1)
    w2 = jax.random.uniform(k3, (hidden_dim, output_dim), jnp.float32, -lim2, lim2)
    b2 = jax.random.uniform(k4, (1, output_dim), jnp.float32, -lim2, lim2)
    return w1, b1, w2, b2


if __name__ == "__main__":
    # Small shapes consistent with the module: latent -> hidden -> output.
    # Batch of 256 exercises the batch grid (2 "parallel" steps of 128 rows).
    batch, latent_dim, hidden_dim, output_dim = 256, 16, 32, 64

    key = jax.random.PRNGKey(0)
    kx, kp = jax.random.split(key)
    x = jax.random.normal(kx, (batch, latent_dim), jnp.float32)
    w1, b1, w2, b2 = init_params(kp, latent_dim, hidden_dim, output_dim)

    # One-time (init-time) weight padding + bf16 cast; reused across calls.
    params_p = prepare_params(w1, b1, w2, b2)

    out = decoder_forward(x, *params_p)
    jax.block_until_ready(out)

    # Pure-JAX f32 reference of the forward semantics (bf16 matmul operands in
    # the kernel -> loosened tolerance; this is precision, not a math error).
    h_ref = jnp.maximum(x @ w1 + b1, 0.0)
    ref = jax.nn.sigmoid(h_ref @ w2 + b2)
    assert out.shape == (batch, output_dim)
    assert jnp.allclose(out, ref, atol=2e-2, rtol=2e-2), float(jnp.max(jnp.abs(out - ref)))

    print("KERNEL_OK")
</pallas_src>

<mosaic_0001>
module attributes {stable_mosaic.version = 11 : i64} {
  func.func @decoder_kernel(%arg0: i32, %arg1: memref<128x16xf32, #tpu.memory_space<vmem>>, %arg2: memref<16x128xbf16, #tpu.memory_space<vmem>>, %arg3: memref<1x128xf32, #tpu.memory_space<vmem>>, %arg4: memref<128x64xbf16, #tpu.memory_space<vmem>>, %arg5: memref<1x64xf32, #tpu.memory_space<vmem>>, %arg6: memref<128x64xf32, #tpu.memory_space<vmem>>) attributes {dimension_semantics = [#tpu.dimension_semantics<parallel>], iteration_bounds = array<i64: 2>, scalar_prefetch = 0 : i64, scratch_operands = 0 : i64, tpu.core_type = #tpu.core_type<tc>, window_params = [{transform_indices = @transform_0, window_bounds = array<i64: 128, 16>}, {pipeline_mode = #tpu.pipeline_mode<synchronous>, transform_indices = @transform_1, window_bounds = array<i64: 16, 128>}, {pipeline_mode = #tpu.pipeline_mode<synchronous>, transform_indices = @transform_2, window_bounds = array<i64: 1, 128>}, {pipeline_mode = #tpu.pipeline_mode<synchronous>, transform_indices = @transform_3, window_bounds = array<i64: 128, 64>}, {pipeline_mode = #tpu.pipeline_mode<synchronous>, transform_indices = @transform_4, window_bounds = array<i64: 1, 64>}, {transform_indices = @transform_5, window_bounds = array<i64: 128, 64>}]} {
    %c0 = arith.constant 0 : index
    %c0_0 = arith.constant 0 : index
    %0 = vector.load %arg1[%c0, %c0_0] : memref<128x16xf32, #tpu.memory_space<vmem>>, vector<128x16xf32>
    %1 = arith.truncf %0 : vector<128x16xf32> to vector<128x16xbf16>
    %c0_1 = arith.constant 0 : index
    %c0_2 = arith.constant 0 : index
    %2 = vector.load %arg2[%c0_1, %c0_2] : memref<16x128xbf16, #tpu.memory_space<vmem>>, vector<16x128xbf16>
    %cst = arith.constant dense<0.000000e+00> : vector<128x128xf32>
    %3 = tpu.matmul %1, %2, %cst {dimension_numbers = #tpu.dot_dimension_numbers<[1], [0], [0], [1], [0, 0, 1, 1], [], []>} : vector<128x16xbf16>, vector<16x128xbf16>, vector<128x128xf32> -> vector<128x128xf32>
    %c0_3 = arith.constant 0 : index
    %c0_4 = arith.constant 0 : index
    %4 = vector.load %arg3[%c0_3, %c0_4] : memref<1x128xf32, #tpu.memory_space<vmem>>, vector<1x128xf32>
    %5 = vector.broadcast %4 : vector<1x128xf32> to vector<128x128xf32>
    %6 = arith.addf %3, %5 : vector<128x128xf32>
    %cst_5 = arith.constant 0.000000e+00 : f32
    %7 = vector.broadcast %cst_5 : f32 to vector<128x128xf32>
    %8 = arith.maximumf %6, %7 : vector<128x128xf32>
    %9 = arith.truncf %8 : vector<128x128xf32> to vector<128x128xbf16>
    %c0_6 = arith.constant 0 : index
    %c0_7 = arith.constant 0 : index
    %10 = vector.load %arg4[%c0_6, %c0_7] : memref<128x64xbf16, #tpu.memory_space<vmem>>, vector<128x64xbf16>
    %cst_8 = arith.constant dense<0.000000e+00> : vector<128x64xf32>
    %11 = tpu.matmul %9, %10, %cst_8 {dimension_numbers = #tpu.dot_dimension_numbers<[1], [0], [0], [1], [0, 0, 1, 1], [], []>} : vector<128x128xbf16>, vector<128x64xbf16>, vector<128x64xf32> -> vector<128x64xf32>
    %c0_9 = arith.constant 0 : index
    %c0_10 = arith.constant 0 : index
    %12 = vector.load %arg5[%c0_9, %c0_10] : memref<1x64xf32, #tpu.memory_space<vmem>>, vector<1x64xf32>
    %13 = vector.broadcast %12 : vector<1x64xf32> to vector<128x64xf32>
    %14 = arith.addf %11, %13 : vector<128x64xf32>
    %15 = arith.negf %14 : vector<128x64xf32>
    %16 = math.exp %15 : vector<128x64xf32>
    %cst_11 = arith.constant 1.000000e+00 : f32
    %17 = vector.broadcast %cst_11 : f32 to vector<128x64xf32>
    %18 = arith.addf %17, %16 : vector<128x64xf32>
    %19 = arith.divf %17, %18 : vector<128x64xf32>
    %c0_12 = arith.constant 0 : index
    %c0_13 = arith.constant 0 : index
    %20 = vector.load %arg6[%c0_12, %c0_13] : memref<128x64xf32, #tpu.memory_space<vmem>>, vector<128x64xf32>
    tpu.vector_store %arg6[%c0_12, %c0_13], %19 {strides = array<i32>} : memref<128x64xf32, #tpu.memory_space<vmem>>, vector<128x64xf32>,
    return
  }
  func.func @transform_0(%arg0: i32) -> (i32, i32) {
    %c0_i32 = arith.constant 0 : i32
    %c0_i32_0 = arith.constant 0 : i32
    return %arg0, %c0_i32 : i32, i32
  }
  func.func @transform_1(%arg0: i32) -> (i32, i32) {
    %c0_i32 = arith.constant 0 : i32
    %c0_i32_0 = arith.constant 0 : i32
    %c0_i32_1 = arith.constant 0 : i32
    return %c0_i32, %c0_i32_0 : i32, i32
  }
  func.func @transform_2(%arg0: i32) -> (i32, i32) {
    %c0_i32 = arith.constant 0 : i32
    %c0_i32_0 = arith.constant 0 : i32
    %c0_i32_1 = arith.constant 0 : i32
    return %c0_i32, %c0_i32_0 : i32, i32
  }
  func.func @transform_3(%arg0: i32) -> (i32, i32) {
    %c0_i32 = arith.constant 0 : i32
    %c0_i32_0 = arith.constant 0 : i32
    %c0_i32_1 = arith.constant 0 : i32
    return %c0_i32, %c0_i32_0 : i32, i32
  }
  func.func @transform_4(%arg0: i32) -> (i32, i32) {
    %c0_i32 = arith.constant 0 : i32
    %c0_i32_0 = arith.constant 0 : i32
    %c0_i32_1 = arith.constant 0 : i32
    return %c0_i32, %c0_i32_0 : i32, i32
  }
  func.func @transform_5(%arg0: i32) -> (i32, i32) {
    %c0_i32 = arith.constant 0 : i32
    %c0_i32_0 = arith.constant 0 : i32
    return %arg0, %c0_i32 : i32, i32
  }
}

</mosaic_0001>

<llo_original>
// kernel: tpu_custom_call.1
$region0: #{tpu_custom_call.1}
  #allocation0 [shape = 'u32[]', space=smem, size = 0x4, offset = 0x4, fixed_abs, tag = 'smem constant byte address 0x4 - core index']
  #allocation1 [shape = 'u32[144,128]{1,0:T(1,128)}', space=vmem, size = 0x12000, scoped, tag = 'internal scratch']
  %s0 = inlined_call_operand.vmem [shape: f32[256,16], index: 0, kind: input, shape index: {}]
  %s1 = inlined_call_operand.vmem [shape: bf16[16,128], index: 1, kind: input, shape index: {}]
  %s2 = inlined_call_operand.vmem [shape: f32[1,128], index: 2, kind: input, shape index: {}]
  %s3 = inlined_call_operand.vmem [shape: bf16[128,64], index: 3, kind: input, shape index: {}]
  %s4 = inlined_call_operand.vmem [shape: f32[1,64], index: 4, kind: input, shape index: {}]
  %s5 = inlined_call_operand.vmem [shape: f32[256,64], index: 5, kind: output, shape index: {}]
  %s6 = sld [smem:[#allocation0]]
  $region53: #{tpu_custom_call.1} parent=0
    _
  %s8 = ssub.s32 1, %s6
  %s9 = scalar_select 0, %s8, %s6
  loop: start=0, step=1, limit=4
  $region2: #{tpu_custom_call.1} parent=0 // loop_pre_header
    _
  $region3: #{tpu_custom_call.1} parent=0 // loop_header
    %s11 = sphi 0, %s15
    %p12 = scmp.ge.s32.totalorder %s11, 4
    %s21 = sphi 0, %s23
    %s24 = sphi 0, %s21
    %s25 = sphi 0, %s24
    %s41 = sphi 0, %s25
    %s45 = sphi 0, %s45
    %s47 = sphi 0, %s45
    %s48 = sphi 0, %s47
    %s62 = sphi 0, %s48
    %s66 = sphi 0, %s66
    %s68 = sphi 0, %s66
    %s69 = sphi 0, %s68
    %s83 = sphi 0, %s69
    %s87 = sphi 0, %s87
    %s89 = sphi 0, %s87
    %s90 = sphi 0, %s89
    %s104 = sphi 0, %s90
    %s108 = sphi 0, %s108
    %s110 = sphi 0, %s108
    %s111 = sphi 0, %s110
    %s125 = sphi 0, %s111
    %s131 = sphi 0, %s133
    %s134 = sphi 0, %s131
    %s135 = sphi 0, %s134
    %s151 = sphi 0, %s135
  $region4: #{tpu_custom_call.1} parent=0 // loop_header_branch
    %14 = sbr.rel (%p12) target = $region8
  $region5: #{tpu_custom_call.1} parent=0 // loop_body
    %s16 = ssub.s32 %s11, 1
    %s17 = ssub.s32 %s11, 2
    %s18 = sadd.s32 %s11, 1
    %s19 = ssub.s32 %s11, %s18
    %p20 = scmp.eq.s32.totalorder %s19, 0
    %s22 = sadd.s32 %s21, 1
    %s23 = scalar_select %p20, %s21, %s22
    %p26 = pneg %p20
    %p27 = scmp.eq.s32.totalorder %s11, 1
    %p28 = por %p26, %p27
    %p29 = scmp.ne.s32.totalorder %s21, %s24
    %p30 = scmp.eq.s32.totalorder %s11, 0
    %p31 = por %p29, %p30
    %p32 = scmp.ne.s32.totalorder %s21, %s24
    %p33 = scmp.eq.s32.totalorder %s16, 1
    %p34 = por %p32, %p33
    %p35 = scmp.ne.s32.totalorder %s24, %s25
    %p36 = scmp.eq.s32.totalorder %s16, 0
    %p37 = por %p35, %p36
    %p38 = scmp.ne.s32.totalorder %s24, %s25
    %p39 = scmp.eq.s32.totalorder %s17, 1
    %p40 = por %p38, %p39
    %p42 = scmp.ne.s32.totalorder %s25, %s41
    %p43 = scmp.eq.s32.totalorder %s17, 0
    %p44 = por %p42, %p43
    %s46 = sadd.s32 %s45, 1
    %p49 = scmp.eq.s32.totalorder %s11, 1
    %p50 = scmp.ne.s32.totalorder %s45, %s47
    %p51 = scmp.eq.s32.totalorder %s11, 0
    %p52 = por %p50, %p51
    %p53 = scmp.ne.s32.totalorder %s45, %s47
    %p54 = scmp.eq.s32.totalorder %s16, 1
    %p55 = por %p53, %p54
    %p56 = scmp.ne.s32.totalorder %s47, %s48
    %p57 = scmp.eq.s32.totalorder %s16, 0
    %p58 = por %p56, %p57
    %p59 = scmp.ne.s32.totalorder %s47, %s48
    %p60 = scmp.eq.s32.totalorder %s17, 1
    %p61 = por %p59, %p60
    %p63 = scmp.ne.s32.totalorder %s48, %s62
    %p64 = scmp.eq.s32.totalorder %s17, 0
    %p65 = por %p63, %p64
    %s67 = sadd.s32 %s66, 1
    %p70 = scmp.eq.s32.totalorder %s11, 1
    %p71 = scmp.ne.s32.totalorder %s66, %s68
    %p72 = scmp.eq.s32.totalorder %s11, 0
    %p73 = por %p71, %p72
    %p74 = scmp.ne.s32.totalorder %s66, %s68
    %p75 = scmp.eq.s32.totalorder %s16, 1
    %p76 = por %p74, %p75
    %p77 = scmp.ne.s32.totalorder %s68, %s69
    %p78 = scmp.eq.s32.totalorder %s16, 0
    %p79 = por %p77, %p78
    %p80 = scmp.ne.s32.totalorder %s68, %s69
    %p81 = scmp.eq.s32.totalorder %s17, 1
    %p82 = por %p80, %p81
    %p84 = scmp.ne.s32.totalorder %s69, %s83
    %p85 = scmp.eq.s32.totalorder %s17, 0
    %p86 = por %p84, %p85
    %s88 = sadd.s32 %s87, 1
    %p91 = scmp.eq.s32.totalorder %s11, 1
    %p92 = scmp.ne.s32.totalorder %s87, %s89
    %p93 = scmp.eq.s32.totalorder %s11, 0
    %p94 = por %p92, %p93
    %p95 = scmp.ne.s32.totalorder %s87, %s89
    %p96 = scmp.eq.s32.totalorder %s16, 1
    %p97 = por %p95, %p96
    %p98 = scmp.ne.s32.totalorder %s89, %s90
    %p99 = scmp.eq.s32.totalorder %s16, 0
    %p100 = por %p98, %p99
    %p101 = scmp.ne.s32.totalorder %s89, %s90
    %p102 = scmp.eq.s32.totalorder %s17, 1
    %p103 = por %p101, %p102
    %p105 = scmp.ne.s32.totalorder %s90, %s104
    %p106 = scmp.eq.s32.totalorder %s17, 0
    %p107 = por %p105, %p106
    %s109 = sadd.s32 %s108, 1
    %p112 = scmp.eq.s32.totalorder %s11, 1
    %p113 = scmp.ne.s32.totalorder %s108, %s110
    %p114 = scmp.eq.s32.totalorder %s11, 0
    %p115 = por %p113, %p114
    %p116 = scmp.ne.s32.totalorder %s108, %s110
    %p117 = scmp.eq.s32.totalorder %s16, 1
    %p118 = por %p116, %p117
    %p119 = scmp.ne.s32.totalorder %s110, %s111
    %p120 = scmp.eq.s32.totalorder %s16, 0
    %p121 = por %p119, %p120
    %p122 = scmp.ne.s32.totalorder %s110, %s111
    %p123 = scmp.eq.s32.totalorder %s17, 1
    %p124 = por %p122, %p123
    %p126 = scmp.ne.s32.totalorder %s111, %s125
    %p127 = scmp.eq.s32.totalorder %s17, 0
    %p128 = por %p126, %p127
    %s129 = ssub.s32 %s11, %s18
    %p130 = scmp.eq.s32.totalorder %s129, 0
    %s132 = sadd.s32 %s131, 1
    %s133 = scalar_select %p130, %s131, %s132
    %p136 = pneg %p130
    %p137 = scmp.eq.s32.totalorder %s11, 1
    %p138 = por %p136, %p137
    %p139 = scmp.ne.s32.totalorder %s131, %s134
    %p140 = scmp.eq.s32.totalorder %s11, 0
    %p141 = por %p139, %p140
    %p142 = scmp.ne.s32.totalorder %s131, %s134
    %p143 = scmp.eq.s32.totalorder %s16, 1
    %p144 = por %p142, %p143
    %p145 = scmp.ne.s32.totalorder %s134, %s135
    %p146 = scmp.eq.s32.totalorder %s16, 0
    %p147 = por %p145, %p146
    %p148 = scmp.ne.s32.totalorder %s134, %s135
    %p149 = scmp.eq.s32.totalorder %s17, 1
    %p150 = por %p148, %p149
    %p152 = scmp.ne.s32.totalorder %s135, %s151
    %p153 = scmp.eq.s32.totalorder %s17, 0
    %p154 = por %p152, %p153
    %p155 = scmp.le.s32.totalorder 1, %s11
    %p156 = scmp.lt.s32.totalorder %s11, 3
    %p157 = pnand %p155, %p156
    %p158 = pneg %p157
    // Predicated region
    $region9: #{tpu_custom_call.1} parent=5 // pred_check
      _
    $region10: #{tpu_custom_call.1} parent=5 // pred_check_branch
      %160 = sbr.rel (%p157) target = $region12
    $region11: #{tpu_custom_call.1} parent=5 // pred_region
      %s161 = ssub.s32 %s11, 1
      // Predicated region
      $region13: #{tpu_custom_call.1} parent=11 // pred_check
        %p162 = pneg %p58
      $region14: #{tpu_custom_call.1} parent=11 // pred_check_branch
        %164 = sbr.rel (%p162) target = $region16
      $region15: #{tpu_custom_call.1} parent=11 // pred_region
        _
      $region16: #{tpu_custom_call.1} parent=11 // pred_fallthru
        _
      // Predicated region
      $region17: #{tpu_custom_call.1} parent=11 // pred_check
        %p165 = pneg %p79
      $region18: #{tpu_custom_call.1} parent=11 // pred_check_branch
        %167 = sbr.rel (%p165) target = $region20
      $region19: #{tpu_custom_call.1} parent=11 // pred_region
        _
      $region20: #{tpu_custom_call.1} parent=11 // pred_fallthru
        _
      // Predicated region
      $region21: #{tpu_custom_call.1} parent=11 // pred_check
        %p168 = pneg %p100
      $region22: #{tpu_custom_call.1} parent=11 // pred_check_branch
        %170 = sbr.rel (%p168) target = $region24
      $region23: #{tpu_custom_call.1} parent=11 // pred_region
        _
      $region24: #{tpu_custom_call.1} parent=11 // pred_fallthru
        _
      // Predicated region
      $region25: #{tpu_custom_call.1} parent=11 // pred_check
        %p171 = pneg %p121
      $region26: #{tpu_custom_call.1} parent=11 // pred_check_branch
        %173 = sbr.rel (%p171) target = $region28
      $region27: #{tpu_custom_call.1} parent=11 // pred_region
        _
      $region28: #{tpu_custom_call.1} parent=11 // pred_fallthru
        _
    $region12: #{tpu_custom_call.1} parent=5 // pred_fallthru
      _
    %p174 = scmp.lt.s32.totalorder %s11, 2
    // Predicated region
    $region29: #{tpu_custom_call.1} parent=5 // pred_check
      %p175 = pneg %p174
    $region30: #{tpu_custom_call.1} parent=5 // pred_check_branch
      %177 = sbr.rel (%p175) target = $region32
    $region31: #{tpu_custom_call.1} parent=5 // pred_region
      // Predicated region
      $region33: #{tpu_custom_call.1} parent=31 // pred_check
        %p178 = pneg %p31
      $region34: #{tpu_custom_call.1} parent=31 // pred_check_branch
        %180 = sbr.rel (%p178) target = $region36
      $region35: #{tpu_custom_call.1} parent=31 // pred_region
        %s181 = smul.u32 16, %s11
        %p182 = scmp.lt.s32.totalorder %s181, 31
        %s183 = scalar_select %p182, %s181, 31
        %s184 = smul.addr %s183, 8
        %s185 = scalar_lea.vmem %s0, %s184
        %s186 = smul.u32 16, %s11
      $region36: #{tpu_custom_call.1} parent=31 // pred_fallthru
        _
    $region32: #{tpu_custom_call.1} parent=5 // pred_fallthru
      _
    %p187 = scmp.le.s32.totalorder 1, %s11
    %p188 = scmp.lt.s32.totalorder %s11, 3
    %p189 = pnand %p187, %p188
    %p190 = pneg %p189
    // Predicated region
    $region37: #{tpu_custom_call.1} parent=5 // pred_check
      _
    $region38: #{tpu_custom_call.1} parent=5 // pred_check_branch
      %192 = sbr.rel (%p189) target = $region40
    $region39: #{tpu_custom_call.1} parent=5 // pred_region
      %s193 = ssub.s32 %s11, 1
      %s194 = smul.u32 16, %s16
      %p195 = scmp.lt.s32.totalorder %s194, 31
      %s196 = scalar_select %p195, %s194, 31
      %s197 = smul.addr %s196, 8
      %s198 = scalar_lea.vmem %s0, %s197
      %p199 = pneg %p37
      %p200 = pneg %p34
      %p201 = pneg %p58
      %p202 = pneg %p55
      %p203 = pneg %p79
      %p204 = pneg %p76
      %p205 = pneg %p100
      %p206 = pneg %p97
      %p207 = pneg %p121
      %p208 = pneg %p118
      %p209 = pneg %p147
      %p210 = pneg %p144
      %s211 = smul.u32 16, %s16
      %p212 = scmp.lt.s32.totalorder %s211, 31
      %s213 = scalar_select %p212, %s211, 31
      %s214 = smul.addr %s213, 8
      %s215 = scalar_lea.vmem %s5, %s214
      %s216 = smul.u32 16, %s16
      %p217 = scmp.lt.s32.totalorder %s216, 31
      %s218 = scalar_select %p217, %s216, 31
      %s219 = smul.addr %s218, 8
      %s220 = scalar_lea.vmem %s0, %s219
      %s221 = smul.u32 16, %s16
      %s222 = smul.u32 16, %s16
      %p223 = scmp.lt.s32.totalorder %s222, 31
      %s224 = scalar_select %p223, %s222, 31
      %s225 = smul.addr %s224, 8
      %s226 = scalar_lea.vmem %s5, %s225
      %s227 = smul.u32 16, %s16
      %v229 = vld [vmem:[%s220] sm:$0xff]
      %v230 = vld [vmem:[%s220 + $0x8] sm:$0xff]
      %v231 = vld [vmem:[%s220 + $0x10] sm:$0xff]
      %v232 = vld [vmem:[%s220 + $0x18] sm:$0xff]
      %v233 = vld [vmem:[%s220 + $0x20] sm:$0xff]
      %v234 = vld [vmem:[%s220 + $0x28] sm:$0xff]
      %v235 = vld [vmem:[%s220 + $0x30] sm:$0xff]
      %v236 = vld [vmem:[%s220 + $0x38] sm:$0xff]
      %v237 = vld [vmem:[%s220 + $0x40] sm:$0xff]
      %v238 = vld [vmem:[%s220 + $0x48] sm:$0xff]
      %v239 = vld [vmem:[%s220 + $0x50] sm:$0xff]
      %v240 = vld [vmem:[%s220 + $0x58] sm:$0xff]
      %v241 = vld [vmem:[%s220 + $0x60] sm:$0xff]
      %v242 = vld [vmem:[%s220 + $0x68] sm:$0xff]
      %v243 = vld [vmem:[%s220 + $0x70] sm:$0xff]
      %v244 = vld [vmem:[%s220 + $0x78] sm:$0xff]
      %v245 = vpack.c.bf16 %v230, %v229
      %v246 = vpack.c.bf16 %v232, %v231
      %v247 = vpack.c.bf16 %v234, %v233
      %v248 = vpack.c.bf16 %v236, %v235
      %v249 = vpack.c.bf16 %v238, %v237
      %v250 = vpack.c.bf16 %v240, %v239
      %v251 = vpack.c.bf16 %v242, %v241
      %v252 = vpack.c.bf16 %v244, %v243
      %v253 = vld [vmem:[%s1] sm:$0xf]
      %v254 = vld [vmem:[%s1 + $0x4] sm:$0xf]
      %v255 = vld [vmem:[%s2] sm:$0x1]
      %v257 = vlaneseq
      %v258 = vshrl.u32 %v257, 7
      %v259 = vsub.s32 0, %v258
      %v260 = vrot.slane %v255, %v259
      %v264 = vunpack.c.l.b16 %v253
      %v265 = vunpack.c.l.b16 %v254
      %v266 = vpack.c.b16 %v265, %v264
      %vm268 = vcmask 130048
      %v270 = vsel %vm268, %v245, 0
      %v273 = vsel %vm268, %v246, 0
      %v276 = vsel %vm268, %v247, 0
      %v279 = vsel %vm268, %v248, 0
      %v282 = vsel %vm268, %v249, 0
      %v285 = vsel %vm268, %v250, 0
      %v288 = vsel %vm268, %v251, 0
      %v291 = vsel %vm268, %v252, 0
      %293 = vmatprep.subr.bf16.mxu0 0
      %294 = vmatpush1.bf16.msra.mxu0 0
      %295 = vmatprep.subr.bf16.mxu0 0
      %296 = vmatpush1.bf16.msra.mxu0 0
      %297 = vmatprep.subr.bf16.mxu0 0
      %298 = vmatpush1.bf16.msra.mxu0 0
      %299 = vmatprep.subr.bf16.mxu0 0
      %300 = vmatpush1.bf16.msra.mxu0 0
      %301 = vmatprep.subr.bf16.mxu0 0
      %302 = vmatpush1.bf16.msra.mxu0 0
      %303 = vmatprep.subr.bf16.mxu0 0
      %304 = vmatpush1.bf16.msra.mxu0 0
      %305 = vmatprep.subr.bf16.mxu0 0
      %306 = vmatpush1.bf16.msra.mxu0 0
      %307 = vmatprep.subr.bf16.mxu0 0
      %308 = vmatpush1.bf16.msra.mxu0 %v266
      %309 = vmatprep.subr.bf16.mxu0 0
      %310 = vmatpush2.bf16.msra.mxu0 0
      %311 = vmatprep.subr.bf16.mxu0 0
      %312 = vmatpush2.bf16.msra.mxu0 0
      %313 = vmatprep.subr.bf16.mxu0 0
      %314 = vmatpush2.bf16.msra.mxu0 0
      %315 = vmatprep.subr.bf16.mxu0 0
      %316 = vmatpush2.bf16.msra.mxu0 0
      %317 = vmatprep.subr.bf16.mxu0 0
      %318 = vmatpush2.bf16.msra.mxu0 0
      %319 = vmatprep.subr.bf16.mxu0 0
      %320 = vmatpush2.bf16.msra.mxu0 0
      %321 = vmatprep.subr.bf16.mxu0 0
      %322 = vmatpush2.bf16.msra.mxu0 0
      %323 = vmatprep.subr.bf16.mxu0 0
      %324 = vmatpush2.bf16.msra.mxu0 0
      %325 = vmatprep.mubr.bf16.mxu0 0
      %326 = vmatmul.mubr.bf16.gmra.mxu0 %v270
      %v327 = vpop.f32.mrf.mxu0
      %v328 = vadd.f32 %v260, %v327
      %v329 = vpop.f32.mrf.mxu0
      %v330 = vpop.f32.mrf.mxu0
      %v331 = vadd.f32 %v260, %v330
      %v332 = vpop.f32.mrf.mxu0
      %333 = vmatprep.mubr.bf16.mxu0 0
      %334 = vmatmul.mubr.bf16.gmra.mxu0 %v273
      %v335 = vpop.f32.mrf.mxu0
      %v336 = vadd.f32 %v260, %v335
      %v337 = vpop.f32.mrf.mxu0
      %v338 = vpop.f32.mrf.mxu0
      %v339 = vadd.f32 %v260, %v338
      %v340 = vpop.f32.mrf.mxu0
      %341 = vmatprep.mubr.bf16.mxu0 0
      %342 = vmatmul.mubr.bf16.gmra.mxu0 %v276
      %v343 = vpop.f32.mrf.mxu0
      %v344 = vadd.f32 %v260, %v343
      %v345 = vpop.f32.mrf.mxu0
      %v346 = vpop.f32.mrf.mxu0
      %v347 = vadd.f32 %v260, %v346
      %v348 = vpop.f32.mrf.mxu0
      %349 = vmatprep.mubr.bf16.mxu0 0
      %350 = vmatmul.mubr.bf16.gmra.mxu0 %v279
      %v351 = vpop.f32.mrf.mxu0
      %v352 = vadd.f32 %v260, %v351
      %v353 = vpop.f32.mrf.mxu0
      %v354 = vpop.f32.mrf.mxu0
      %v355 = vadd.f32 %v260, %v354
      %v356 = vpop.f32.mrf.mxu0
      %357 = vmatprep.mubr.bf16.mxu0 0
      %358 = vmatmul.mubr.bf16.gmra.mxu0 %v282
      %v359 = vpop.f32.mrf.mxu0
      %v360 = vadd.f32 %v260, %v359
      %v361 = vpop.f32.mrf.mxu0
      %v362 = vpop.f32.mrf.mxu0
      %v363 = vadd.f32 %v260, %v362
      %v364 = vpop.f32.mrf.mxu0
      %365 = vmatprep.mubr.bf16.mxu0 0
      %366 = vmatmul.mubr.bf16.gmra.mxu0 %v285
      %v367 = vpop.f32.mrf.mxu0
      %v368 = vadd.f32 %v260, %v367
      %v369 = vpop.f32.mrf.mxu0
      %v370 = vpop.f32.mrf.mxu0
      %v371 = vadd.f32 %v260, %v370
      %v372 = vpop.f32.mrf.mxu0
      %373 = vmatprep.mubr.bf16.mxu0 0
      %374 = vmatmul.mubr.bf16.gmra.mxu0 %v288
      %v375 = vpop.f32.mrf.mxu0
      %v376 = vadd.f32 %v260, %v375
      %v377 = vpop.f32.mrf.mxu0
      %v378 = vpop.f32.mrf.mxu0
      %v379 = vadd.f32 %v260, %v378
      %v380 = vpop.f32.mrf.mxu0
      %381 = vmatprep.mubr.bf16.mxu0 0
      %382 = vmatmul.mubr.bf16.gmra.mxu0 %v291
      %v383 = vpop.f32.mrf.mxu0
      %v384 = vadd.f32 %v260, %v383
      %v385 = vpop.f32.mrf.mxu0
      %v386 = vpop.f32.mrf.mxu0
      %v387 = vadd.f32 %v260, %v386
      %v388 = vpop.f32.mrf.mxu0
      %389 = vdwg.mxu0
      %v390 = vmax.f32 %v328, 0.0
      %v391 = vmax.f32 %v331, 0.0
      %v392 = vmax.f32 %v336, 0.0
      %v393 = vmax.f32 %v339, 0.0
      %v394 = vmax.f32 %v344, 0.0
      %v395 = vmax.f32 %v347, 0.0
      %v396 = vmax.f32 %v352, 0.0
      %v397 = vmax.f32 %v355, 0.0
      %v398 = vmax.f32 %v360, 0.0
      %v399 = vmax.f32 %v363, 0.0
      %v400 = vmax.f32 %v368, 0.0
      %v401 = vmax.f32 %v371, 0.0
      %v402 = vmax.f32 %v376, 0.0
      %v403 = vmax.f32 %v379, 0.0
      %v404 = vmax.f32 %v384, 0.0
      %v405 = vmax.f32 %v387, 0.0
      %v406 = vpack.c.bf16 %v391, %v390
      %v407 = vpack.c.bf16 %v393, %v392
      %v408 = vpack.c.bf16 %v395, %v394
      %v409 = vpack.c.bf16 %v397, %v396
      %v410 = vpack.c.bf16 %v399, %v398
      %v411 = vpack.c.bf16 %v401, %v400
      %v412 = vpack.c.bf16 %v403, %v402
      %v413 = vpack.c.bf16 %v405, %v404
      %v414 = vld [vmem:[%s3] sm:$0xf]
      %v415 = vld [vmem:[%s3 + $0x4] sm:$0xf]
      %v416 = vld [vmem:[%s3 + $0x8] sm:$0xf]
      %v417 = vld [vmem:[%s3 + $0xc] sm:$0xf]
      %v418 = vld [vmem:[%s3 + $0x10] sm:$0xf]
      %v419 = vld [vmem:[%s3 + $0x14] sm:$0xf]
      %v420 = vld [vmem:[%s3 + $0x18] sm:$0xf]
      %v421 = vld [vmem:[%s3 + $0x1c] sm:$0xf]
      %v422 = vld [vmem:[%s3 + $0x20] sm:$0xf]
      %v423 = vld [vmem:[%s3 + $0x24] sm:$0xf]
      %v424 = vld [vmem:[%s3 + $0x28] sm:$0xf]
      %v425 = vld [vmem:[%s3 + $0x2c] sm:$0xf]
      %v426 = vld [vmem:[%s3 + $0x30] sm:$0xf]
      %v427 = vld [vmem:[%s3 + $0x34] sm:$0xf]
      %v428 = vld [vmem:[%s3 + $0x38] sm:$0xf]
      %v429 = vld [vmem:[%s3 + $0x3c] sm:$0xf]
      %v430 = vld [vmem:[%s4] sm:$0x1]
      %v432 = vlaneseq
      %v433 = vshrl.u32 %v432, 7
      %v434 = vsub.s32 0, %v433
      %v435 = vrot.slane %v430, %v434
      %v453 = vunpack.c.l.b16 %v414
      %v454 = vunpack.c.l.b16 %v415
      %v455 = vunpack.c.l.b16 %v416
      %v456 = vunpack.c.l.b16 %v417
      %v457 = vunpack.c.l.b16 %v418
      %v458 = vunpack.c.l.b16 %v419
      %v459 = vunpack.c.l.b16 %v420
      %v460 = vunpack.c.l.b16 %v421
      %v461 = vunpack.c.l.b16 %v422
      %v462 = vunpack.c.l.b16 %v423
      %v463 = vunpack.c.l.b16 %v424
      %v464 = vunpack.c.l.b16 %v425
      %v465 = vunpack.c.l.b16 %v426
      %v466 = vunpack.c.l.b16 %v427
      %v467 = vunpack.c.l.b16 %v428
      %v468 = vunpack.c.l.b16 %v429
      %v469 = vpack.c.b16 %v454, %v453
      %v470 = vpack.c.b16 %v456, %v455
      %v471 = vpack.c.b16 %v458, %v457
      %v472 = vpack.c.b16 %v460, %v459
      %v473 = vpack.c.b16 %v462, %v461
      %v474 = vpack.c.b16 %v464, %v463
      %v475 = vpack.c.b16 %v466, %v465
      %v476 = vpack.c.b16 %v468, %v467
      %485 = vmatprep.subr.bf16.mxu0 0
      %486 = vmatpush1.bf16.msra.mxu0 %v476
      %487 = vmatprep.subr.bf16.mxu0 0
      %488 = vmatpush1.bf16.msra.mxu0 %v475
      %489 = vmatprep.subr.bf16.mxu0 0
      %490 = vmatpush1.bf16.msra.mxu0 %v474
      %491 = vmatprep.subr.bf16.mxu0 0
      %492 = vmatpush1.bf16.msra.mxu0 %v473
      %493 = vmatprep.subr.bf16.mxu0 0
      %494 = vmatpush1.bf16.msra.mxu0 %v472
      %495 = vmatprep.subr.bf16.mxu0 0
      %496 = vmatpush1.bf16.msra.mxu0 %v471
      %497 = vmatprep.subr.bf16.mxu0 0
      %498 = vmatpush1.bf16.msra.mxu0 %v470
      %499 = vmatprep.subr.bf16.mxu0 0
      %500 = vmatpush1.bf16.msra.mxu0 %v469
      %501 = vmatprep.subr.bf16.mxu0 0
      %502 = vmatpush2.bf16.msra.mxu0 0
      %503 = vmatprep.subr.bf16.mxu0 0
      %504 = vmatpush2.bf16.msra.mxu0 0
      %505 = vmatprep.subr.bf16.mxu0 0
      %506 = vmatpush2.bf16.msra.mxu0 0
      %507 = vmatprep.subr.bf16.mxu0 0
      %508 = vmatpush2.bf16.msra.mxu0 0
      %509 = vmatprep.subr.bf16.mxu0 0
      %510 = vmatpush2.bf16.msra.mxu0 0
      %511 = vmatprep.subr.bf16.mxu0 0
      %512 = vmatpush2.bf16.msra.mxu0 0
      %513 = vmatprep.subr.bf16.mxu0 0
      %514 = vmatpush2.bf16.msra.mxu0 0
      %515 = vmatprep.subr.bf16.mxu0 0
      %516 = vmatpush2.bf16.msra.mxu0 0
      %517 = vmatprep.mubr.bf16.mxu0 0
      %518 = vmatmul.mubr.bf16.gmra.mxu0 %v406
      %v519 = vpop.f32.mrf.mxu0
      %v520 = vadd.f32 %v435, %v519
      %v521 = vpop.f32.mrf.mxu0
      %v522 = vpop.f32.mrf.mxu0
      %v523 = vadd.f32 %v435, %v522
      %v524 = vpop.f32.mrf.mxu0
      %525 = vmatprep.mubr.bf16.mxu0 0
      %526 = vmatmul.mubr.bf16.gmra.mxu0 %v407
      %v527 = vpop.f32.mrf.mxu0
      %v528 = vadd.f32 %v435, %v527
      %v529 = vpop.f32.mrf.mxu0
      %v530 = vpop.f32.mrf.mxu0
      %v531 = vadd.f32 %v435, %v530
      %v532 = vpop.f32.mrf.mxu0
      %533 = vmatprep.mubr.bf16.mxu0 0
      %534 = vmatmul.mubr.bf16.gmra.mxu0 %v408
      %v535 = vpop.f32.mrf.mxu0
      %v536 = vadd.f32 %v435, %v535
      %v537 = vpop.f32.mrf.mxu0
      %v538 = vpop.f32.mrf.mxu0
      %v539 = vadd.f32 %v435, %v538
      %v540 = vpop.f32.mrf.mxu0
      %541 = vmatprep.mubr.bf16.mxu0 0
      %542 = vmatmul.mubr.bf16.gmra.mxu0 %v409
      %v543 = vpop.f32.mrf.mxu0
      %v544 = vadd.f32 %v435, %v543
      %v545 = vpop.f32.mrf.mxu0
      %v546 = vpop.f32.mrf.mxu0
      %v547 = vadd.f32 %v435, %v546
      %v548 = vpop.f32.mrf.mxu0
      %549 = vmatprep.mubr.bf16.mxu0 0
      %550 = vmatmul.mubr.bf16.gmra.mxu0 %v410
      %v551 = vpop.f32.mrf.mxu0
      %v552 = vadd.f32 %v435, %v551
      %v553 = vpop.f32.mrf.mxu0
      %v554 = vpop.f32.mrf.mxu0
      %v555 = vadd.f32 %v435, %v554
      %v556 = vpop.f32.mrf.mxu0
      %557 = vmatprep.mubr.bf16.mxu0 0
      %558 = vmatmul.mubr.bf16.gmra.mxu0 %v411
      %v559 = vpop.f32.mrf.mxu0
      %v560 = vadd.f32 %v435, %v559
      %v561 = vpop.f32.mrf.mxu0
      %v562 = vpop.f32.mrf.mxu0
      %v563 = vadd.f32 %v435, %v562
      %v564 = vpop.f32.mrf.mxu0
      %565 = vmatprep.mubr.bf16.mxu0 0
      %566 = vmatmul.mubr.bf16.gmra.mxu0 %v412
      %v567 = vpop.f32.mrf.mxu0
      %v568 = vadd.f32 %v435, %v567
      %v569 = vpop.f32.mrf.mxu0
      %v570 = vpop.f32.mrf.mxu0
      %v571 = vadd.f32 %v435, %v570
      %v572 = vpop.f32.mrf.mxu0
      %573 = vmatprep.mubr.bf16.mxu0 0
      %574 = vmatmul.mubr.bf16.gmra.mxu0 %v413
      %v575 = vpop.f32.mrf.mxu0
      %v576 = vadd.f32 %v435, %v575
      %v577 = vpop.f32.mrf.mxu0
      %v578 = vpop.f32.mrf.mxu0
      %v579 = vadd.f32 %v435, %v578
      %v580 = vpop.f32.mrf.mxu0
      %581 = vdwg.mxu0
      %v582 = vxor.u32 %v520, 2147483648
      %v583 = vxor.u32 %v523, 2147483648
      %v584 = vxor.u32 %v528, 2147483648
      %v585 = vxor.u32 %v531, 2147483648
      %v586 = vxor.u32 %v536, 2147483648
      %v587 = vxor.u32 %v539, 2147483648
      %v588 = vxor.u32 %v544, 2147483648
      %v589 = vxor.u32 %v547, 2147483648
      %v590 = vxor.u32 %v552, 2147483648
      %v591 = vxor.u32 %v555, 2147483648
      %v592 = vxor.u32 %v560, 2147483648
      %v593 = vxor.u32 %v563, 2147483648
      %v594 = vxor.u32 %v568, 2147483648
      %v595 = vxor.u32 %v571, 2147483648
      %v596 = vxor.u32 %v576, 2147483648
      %v597 = vxor.u32 %v579, 2147483648
      %v598 = vmul.f32 %v582, 1.442695
      %v599 = vpow.pop %v598
      %v600 = vmul.f32 %v583, 1.442695
      %v601 = vpow.pop %v600
      %v602 = vmul.f32 %v584, 1.442695
      %v603 = vpow.pop %v602
      %v604 = vmul.f32 %v585, 1.442695
      %v605 = vpow.pop %v604
      %v606 = vmul.f32 %v586, 1.442695
      %v607 = vpow.pop %v606
      %v608 = vmul.f32 %v587, 1.442695
      %v609 = vpow.pop %v608
      %v610 = vmul.f32 %v588, 1.442695
      %v611 = vpow.pop %v610
      %v612 = vmul.f32 %v589, 1.442695
      %v613 = vpow.pop %v612
      %v614 = vmul.f32 %v590, 1.442695
      %v615 = vpow.pop %v614
      %v616 = vmul.f32 %v591, 1.442695
      %v617 = vpow.pop %v616
      %v618 = vmul.f32 %v592, 1.442695
      %v619 = vpow.pop %v618
      %v620 = vmul.f32 %v593, 1.442695
      %v621 = vpow.pop %v620
      %v622 = vmul.f32 %v594, 1.442695
      %v623 = vpow.pop %v622
      %v624 = vmul.f32 %v595, 1.442695
      %v625 = vpow.pop %v624
      %v626 = vmul.f32 %v596, 1.442695
      %v627 = vpow.pop %v626
      %v628 = vmul.f32 %v597, 1.442695
      %v629 = vpow.pop %v628
      %v630 = vadd.f32 %v599, 1.0
      %v631 = vadd.f32 %v601, 1.0
      %v632 = vadd.f32 %v603, 1.0
      %v633 = vadd.f32 %v605, 1.0
      %v634 = vadd.f32 %v607, 1.0
      %v635 = vadd.f32 %v609, 1.0
      %v636 = vadd.f32 %v611, 1.0
      %v637 = vadd.f32 %v613, 1.0
      %v638 = vadd.f32 %v615, 1.0
      %v639 = vadd.f32 %v617, 1.0
      %v640 = vadd.f32 %v619, 1.0
      %v641 = vadd.f32 %v621, 1.0
      %v642 = vadd.f32 %v623, 1.0
      %v643 = vadd.f32 %v625, 1.0
      %v644 = vadd.f32 %v627, 1.0
      %v645 = vadd.f32 %v629, 1.0
      %v646 = vrcp.pop %v630
      %v647 = vmul.f32 1.0, %v646
      %v648 = vrcp.pop %v631
      %v649 = vmul.f32 1.0, %v648
      %v650 = vrcp.pop %v632
      %v651 = vmul.f32 1.0, %v650
      %v652 = vrcp.pop %v633
      %v653 = vmul.f32 1.0, %v652
      %v654 = vrcp.pop %v634
      %v655 = vmul.f32 1.0, %v654
      %v656 = vrcp.pop %v635
      %v657 = vmul.f32 1.0, %v656
      %v658 = vrcp.pop %v636
      %v659 = vmul.f32 1.0, %v658
      %v660 = vrcp.pop %v637
      %v661 = vmul.f32 1.0, %v660
      %v662 = vrcp.pop %v638
      %v663 = vmul.f32 1.0, %v662
      %v664 = vrcp.pop %v639
      %v665 = vmul.f32 1.0, %v664
      %v666 = vrcp.pop %v640
      %v667 = vmul.f32 1.0, %v666
      %v668 = vrcp.pop %v641
      %v669 = vmul.f32 1.0, %v668
      %v670 = vrcp.pop %v642
      %v671 = vmul.f32 1.0, %v670
      %v672 = vrcp.pop %v643
      %v673 = vmul.f32 1.0, %v672
      %v674 = vrcp.pop %v644
      %v675 = vmul.f32 1.0, %v674
      %v676 = vrcp.pop %v645
      %v677 = vmul.f32 1.0, %v676
      %vm678 = vcmask 523264
      %679 = vst.msk [vmem:[%s226] sm:$0xff] %vm678, %v647
      %680 = vst.msk [vmem:[%s226 + $0x8] sm:$0xff] %vm678, %v649
      %681 = vst.msk [vmem:[%s226 + $0x10] sm:$0xff] %vm678, %v651
      %682 = vst.msk [vmem:[%s226 + $0x18] sm:$0xff] %vm678, %v653
      %683 = vst.msk [vmem:[%s226 + $0x20] sm:$0xff] %vm678, %v655
      %684 = vst.msk [vmem:[%s226 + $0x28] sm:$0xff] %vm678, %v657
      %685 = vst.msk [vmem:[%s226 + $0x30] sm:$0xff] %vm678, %v659
      %686 = vst.msk [vmem:[%s226 + $0x38] sm:$0xff] %vm678, %v661
      %687 = vst.msk [vmem:[%s226 + $0x40] sm:$0xff] %vm678, %v663
      %688 = vst.msk [vmem:[%s226 + $0x48] sm:$0xff] %vm678, %v665
      %689 = vst.msk [vmem:[%s226 + $0x50] sm:$0xff] %vm678, %v667
      %690 = vst.msk [vmem:[%s226 + $0x58] sm:$0xff] %vm678, %v669
      %691 = vst.msk [vmem:[%s226 + $0x60] sm:$0xff] %vm678, %v671
      %692 = vst.msk [vmem:[%s226 + $0x68] sm:$0xff] %vm678, %v673
      %693 = vst.msk [vmem:[%s226 + $0x70] sm:$0xff] %vm678, %v675
      %694 = vst.msk [vmem:[%s226 + $0x78] sm:$0xff] %vm678, %v677
      %s695 = smul.u32 16, %s16
      %p696 = scmp.lt.s32.totalorder %s695, 31
      %s697 = scalar_select %p696, %s695, 31
      %s698 = smul.addr %s697, 8
      %s699 = scalar_lea.vmem %s5, %s698
      // Predicated region
      $region41: #{tpu_custom_call.1} parent=39 // pred_check
        %p700 = pneg %p144
      $region42: #{tpu_custom_call.1} parent=39 // pred_check_branch
        %702 = sbr.rel (%p700) target = $region44
      $region43: #{tpu_custom_call.1} parent=39 // pred_region
        %s703 = smul.u32 16, %s16
      $region44: #{tpu_custom_call.1} parent=39 // pred_fallthru
        _
    $region40: #{tpu_custom_call.1} parent=5 // pred_fallthru
      _
    %p704 = scmp.le.s32.totalorder 2, %s11
    // Predicated region
    $region45: #{tpu_custom_call.1} parent=5 // pred_check
      %p705 = pneg %p704
    $region46: #{tpu_custom_call.1} parent=5 // pred_check_branch
      %707 = sbr.rel (%p705) target = $region48
    $region47: #{tpu_custom_call.1} parent=5 // pred_region
      %s708 = ssub.s32 %s11, 2
      // Predicated region
      $region49: #{tpu_custom_call.1} parent=47 // pred_check
        %p709 = pneg %p150
      $region50: #{tpu_custom_call.1} parent=47 // pred_check_branch
        %711 = sbr.rel (%p709) target = $region52
      $region51: #{tpu_custom_call.1} parent=47 // pred_region
        %s712 = smul.u32 16, %s17
        %p713 = scmp.lt.s32.totalorder %s712, 31
        %s714 = scalar_select %p713, %s712, 31
        %s715 = smul.addr %s714, 8
        %s716 = scalar_lea.vmem %s5, %s715
      $region52: #{tpu_custom_call.1} parent=47 // pred_fallthru
        _
    $region48: #{tpu_custom_call.1} parent=5 // pred_fallthru
      _
  $region6: #{tpu_custom_call.1} parent=0 // loop_footer
    %s15 = sadd.s32 1, %s11
  $region7: #{tpu_custom_call.1} parent=0 // loop_footer_branch
    %10 = sbr.rel target = $region3
  $region8: #{tpu_custom_call.1} parent=0 // loop_exit
    _

</llo_original>
